<compile_context>
chip_gen: v7x
topology: tpu7x:2x2x1
jax: 0.10.0
libtpu: 0.0.40
codegen_flags: <defaults>
</compile_context>

<pallas_src>
import jax
import jax.numpy as jnp
from jax.experimental import pallas as pl
from jax.experimental.pallas import tpu as pltpu

# Fixed Scharr filters (identical for every channel, groups=channel, bias=False).
SCHARR_X = ((-3.0, 0.0, 3.0),
            (-10.0, 0.0, 10.0),
            (-3.0, 0.0, 3.0))
SCHARR_Y = ((-3.0, -10.0, -3.0),
            (0.0, 0.0, 0.0),
            (3.0, 10.0, 3.0))

BN_EPS = 1e-5      # nn.BatchNorm2d default eps
EDGE_EPS = 1e-6    # sqrt(ex^2 + ey^2 + 1e-6)

# Scoped VMEM cap: explicit, and safe on v5e/v6e (128 MiB phys) and v7x (64 MiB phys).
_VMEM_LIMIT = 48 * 1024 * 1024


def _scharr_mag(x, pad_ref):
    """Separable Scharr magnitude for one (H, W) plane.

    x:       (H, W) f32 value (current image plane).
    pad_ref: (H+2, W+2) f32 VMEM scratch used as a zero-bordered staging plane.
    """
    H, W = x.shape

    # Zero the 1-pixel border every step (cheap thin stores; keeps correctness
    # independent of grid sharding / iteration order), then drop the plane in.
    pad_ref[0:1, :] = jnp.zeros((1, W + 2), jnp.float32)
    pad_ref[H + 1:H + 2, :] = jnp.zeros((1, W + 2), jnp.float32)
    pad_ref[:, 0:1] = jnp.zeros((H + 2, 1), jnp.float32)
    pad_ref[:, W + 1:W + 2] = jnp.zeros((H + 2, 1), jnp.float32)
    pad_ref[1:H + 1, 1:W + 1] = x

    # Vertical pass: three row-shifted reads of the padded plane.
    r0 = pad_ref[0:H, :]          # (H, W+2)
    r1 = pad_ref[1:H + 1, :]
    r2 = pad_ref[2:H + 2, :]
    sv = 3.0 * r0 + 10.0 * r1 + 3.0 * r2   # vertical [3, 10, 3] smooth
    dv = r2 - r0                            # vertical [-1, 0, 1] difference

    # Horizontal pass (lane shifts on in-register values).
    ex = sv[:, 2:] - sv[:, :W]                                   # [-1, 0, 1]
    ey = 3.0 * dv[:, :W] + 10.0 * dv[:, 1:W + 1] + 3.0 * dv[:, 2:]  # [3, 10, 3]

    return jnp.sqrt(ex * ex + ey * ey + EDGE_EPS)


def scharr_stats_kernel(x_ref, sum_ref, sq_ref, pad_ref):
    """Pass 1: per-channel sum / sum-of-squares of the Scharr magnitude."""
    mag = _scharr_mag(x_ref[0, 0], pad_ref)

    @pl.when(pl.program_id(1) == 0)      # first batch element for this channel
    def _():
        sum_ref[...] = jnp.zeros_like(sum_ref)
        sq_ref[...] = jnp.zeros_like(sq_ref)

    sum_ref[...] += jnp.sum(mag)
    sq_ref[...] += jnp.sum(mag * mag)


def scharr_apply_kernel(scale_ref, shift_ref, x_ref, out_ref, pad_ref):
    """Pass 2: recompute conv+magnitude, apply folded BN affine, ReLU."""
    c = pl.program_id(0)
    mag = _scharr_mag(x_ref[0, 0], pad_ref)
    y = mag * scale_ref[c] + shift_ref[c]
    out_ref[0, 0] = jnp.maximum(y, 0.0)


def scharr_forward(x, gamma, beta):
    """x: (N, C, H, W); gamma, beta: (C,).  Returns (N, C, H, W) float32."""
    N, C, H, W = x.shape
    x = x.astype(jnp.float32)
    gamma = gamma.astype(jnp.float32)
    beta = beta.astype(jnp.float32)

    # ---- Pass 1: streamed per-channel statistics of the edge magnitude ----
    sums, sumsq = pl.pallas_call(
        scharr_stats_kernel,
        out_shape=(jax.ShapeDtypeStruct((C, 1, 1), jnp.float32),
                   jax.ShapeDtypeStruct((C, 1, 1), jnp.float32)),
        grid_spec=pltpu.PrefetchScalarGridSpec(
            num_scalar_prefetch=0,
            grid=(C, N),
            in_specs=[
                pl.BlockSpec((1, 1, H, W), lambda c, n: (n, c, 0, 0)),
            ],
            out_specs=(
                pl.BlockSpec((1, 1, 1), lambda c, n: (c, 0, 0)),
                pl.BlockSpec((1, 1, 1), lambda c, n: (c, 0, 0)),
            ),
            scratch_shapes=[pltpu.VMEM((H + 2, W + 2), jnp.float32)],
        ),
        compiler_params=pltpu.CompilerParams(
            dimension_semantics=("parallel", "arbitrary"),
            vmem_limit_bytes=_VMEM_LIMIT,
        ),
    )(x)

    # ---- Fold BatchNorm (training mode: biased batch stats) into scale/shift ----
    count = jnp.float32(N * H * W)
    mean = sums[:, 0, 0] / count
    var = jnp.maximum(sumsq[:, 0, 0] / count - mean * mean, 0.0)
    inv_std = jax.lax.rsqrt(var + BN_EPS)
    scale = gamma * inv_std
    shift = beta - mean * scale

    # ---- Pass 2: recompute conv+magnitude, normalize, ReLU ----
    out = pl.pallas_call(
        scharr_apply_kernel,
        out_shape=jax.ShapeDtypeStruct((N, C, H, W), jnp.float32),
        grid_spec=pltpu.PrefetchScalarGridSpec(
            num_scalar_prefetch=0,
            grid=(C, N),
            in_specs=[
                pl.BlockSpec(memory_space=pltpu.MemorySpace.SMEM),   # scale (C,)
                pl.BlockSpec(memory_space=pltpu.MemorySpace.SMEM),   # shift (C,)
                pl.BlockSpec((1, 1, H, W), lambda c, n: (n, c, 0, 0)),
            ],
            out_specs=pl.BlockSpec((1, 1, H, W), lambda c, n: (n, c, 0, 0)),
            scratch_shapes=[pltpu.VMEM((H + 2, W + 2), jnp.float32)],
        ),
        compiler_params=pltpu.CompilerParams(
            dimension_semantics=("parallel", "parallel"),
            vmem_limit_bytes=_VMEM_LIMIT,
        ),
    )(scale, shift, x)
    return out


def scharr_reference(x, gamma, beta):
    """Pure-JAX reference mirroring the PyTorch forward (training-mode BN)."""
    N, C, H, W = x.shape
    xpad = jnp.pad(x, ((0, 0), (0, 0), (1, 1), (1, 1)))
    ex = jnp.zeros_like(x)
    ey = jnp.zeros_like(x)
    for di in range(3):
        for dj in range(3):
            patch = xpad[:, :, di:di + H, dj:dj + W]
            ex = ex + SCHARR_X[di][dj] * patch
            ey = ey + SCHARR_Y[di][dj] * patch
    mag = jnp.sqrt(ex * ex + ey * ey + EDGE_EPS)
    mean = jnp.mean(mag, axis=(0, 2, 3), keepdims=True)
    var = jnp.mean((mag - mean) ** 2, axis=(0, 2, 3), keepdims=True)
    y = (mag - mean) * jax.lax.rsqrt(var + BN_EPS) * gamma.reshape(1, C, 1, 1) \
        + beta.reshape(1, C, 1, 1)
    return jnp.maximum(y, 0.0)


if __name__ == "__main__":
    key = jax.random.PRNGKey(0)
    N, C, H, W = 2, 4, 16, 16
    x = jax.random.normal(key, (N, C, H, W), dtype=jnp.float32)

    # Deterministic, non-trivial BN affine params to exercise the scale/shift path.
    gamma = 1.0 + 0.1 * jnp.arange(C, dtype=jnp.float32)
    beta = 0.05 * jnp.arange(C, dtype=jnp.float32)

    out = scharr_forward(x, gamma, beta)
    out = jax.block_until_ready(out)

    ref = scharr_reference(x, gamma, beta)
    assert out.shape == (N, C, H, W)
    assert jnp.allclose(out, ref, atol=5e-4, rtol=5e-4), \
        float(jnp.max(jnp.abs(out - ref)))

    print("KERNEL_OK")
</pallas_src>

<mosaic_0001>
module attributes {stable_mosaic.version = 11 : i64} {
  func.func @scharr_stats_kernel(%arg0: i32, %arg1: i32, %arg2: memref<1x1x16x16xf32, #tpu.memory_space<vmem>>, %arg3: memref<1x1x1xf32, #tpu.memory_space<vmem>>, %arg4: memref<1x1x1xf32, #tpu.memory_space<vmem>>, %arg5: memref<18x18xf32, #tpu.memory_space<vmem>>) attributes {dimension_semantics = [#tpu.dimension_semantics<parallel>, #tpu.dimension_semantics<arbitrary>], iteration_bounds = array<i64: 4, 2>, scalar_prefetch = 0 : i64, scratch_operands = 1 : i64, tpu.core_type = #tpu.core_type<tc>, window_params = [{transform_indices = @transform_0, window_bounds = array<i64: 1, 1, 16, 16>}, {transform_indices = @transform_1, window_bounds = array<i64: 1, 1, 1>}, {transform_indices = @transform_2, window_bounds = array<i64: 1, 1, 1>}]} {
    %c0 = arith.constant 0 : index
    %c0_0 = arith.constant 0 : index
    %c0_1 = arith.constant 0 : index
    %c0_2 = arith.constant 0 : index
    %0 = vector.load %arg2[%c0, %c0_0, %c0_1, %c0_2] : memref<1x1x16x16xf32, #tpu.memory_space<vmem>>, vector<1x1x16x16xf32>
    %1 = vector.shape_cast %0 : vector<1x1x16x16xf32> to vector<16x16xf32>
    %cst = arith.constant 0.000000e+00 : f32
    %2 = vector.broadcast %cst : f32 to vector<1x18xf32>
    %c0_3 = arith.constant 0 : index
    %c0_4 = arith.constant 0 : index
    %3 = vector.load %arg5[%c0_3, %c0_4] : memref<18x18xf32, #tpu.memory_space<vmem>>, vector<1x18xf32>
    tpu.vector_store %arg5[%c0_3, %c0_4], %2 {strides = array<i32>} : memref<18x18xf32, #tpu.memory_space<vmem>>, vector<1x18xf32>,
    %cst_5 = arith.constant 0.000000e+00 : f32
    %4 = vector.broadcast %cst_5 : f32 to vector<1x18xf32>
    %c17 = arith.constant 17 : index
    %c0_6 = arith.constant 0 : index
    %5 = vector.load %arg5[%c17, %c0_6] : memref<18x18xf32, #tpu.memory_space<vmem>>, vector<1x18xf32>
    tpu.vector_store %arg5[%c17, %c0_6], %4 {strides = array<i32>} : memref<18x18xf32, #tpu.memory_space<vmem>>, vector<1x18xf32>,
    %cst_7 = arith.constant 0.000000e+00 : f32
    %6 = vector.broadcast %cst_7 : f32 to vector<18x1xf32>
    %c0_8 = arith.constant 0 : index
    %c0_9 = arith.constant 0 : index
    %7 = vector.load %arg5[%c0_8, %c0_9] : memref<18x18xf32, #tpu.memory_space<vmem>>, vector<18x1xf32>
    tpu.vector_store %arg5[%c0_8, %c0_9], %6 {strides = array<i32>} : memref<18x18xf32, #tpu.memory_space<vmem>>, vector<18x1xf32>,
    %cst_10 = arith.constant 0.000000e+00 : f32
    %8 = vector.broadcast %cst_10 : f32 to vector<18x1xf32>
    %c0_11 = arith.constant 0 : index
    %c17_12 = arith.constant 17 : index
    %9 = vector.load %arg5[%c0_11, %c17_12] : memref<18x18xf32, #tpu.memory_space<vmem>>, vector<18x1xf32>
    tpu.vector_store %arg5[%c0_11, %c17_12], %8 {strides = array<i32>} : memref<18x18xf32, #tpu.memory_space<vmem>>, vector<18x1xf32>,
    %c1 = arith.constant 1 : index
    %c1_13 = arith.constant 1 : index
    %10 = vector.load %arg5[%c1, %c1_13] : memref<18x18xf32, #tpu.memory_space<vmem>>, vector<16x16xf32>
    tpu.vector_store %arg5[%c1, %c1_13], %1 {strides = array<i32>} : memref<18x18xf32, #tpu.memory_space<vmem>>, vector<16x16xf32>,
    %c0_14 = arith.constant 0 : index
    %c0_15 = arith.constant 0 : index
    %11 = vector.load %arg5[%c0_14, %c0_15] : memref<18x18xf32, #tpu.memory_space<vmem>>, vector<16x18xf32>
    %c1_16 = arith.constant 1 : index
    %c0_17 = arith.constant 0 : index
    %12 = vector.load %arg5[%c1_16, %c0_17] : memref<18x18xf32, #tpu.memory_space<vmem>>, vector<16x18xf32>
    %c2 = arith.constant 2 : index
    %c0_18 = arith.constant 0 : index
    %13 = vector.load %arg5[%c2, %c0_18] : memref<18x18xf32, #tpu.memory_space<vmem>>, vector<16x18xf32>
    %cst_19 = arith.constant 3.000000e+00 : f32
    %14 = vector.broadcast %cst_19 : f32 to vector<16x18xf32>
    %15 = arith.mulf %14, %11 : vector<16x18xf32>
    %cst_20 = arith.constant 1.000000e+01 : f32
    %16 = vector.broadcast %cst_20 : f32 to vector<16x18xf32>
    %17 = arith.mulf %16, %12 : vector<16x18xf32>
    %18 = arith.addf %15, %17 : vector<16x18xf32>
    %cst_21 = arith.constant 3.000000e+00 : f32
    %19 = vector.broadcast %cst_21 : f32 to vector<16x18xf32>
    %20 = arith.mulf %19, %13 : vector<16x18xf32>
    %21 = arith.addf %18, %20 : vector<16x18xf32>
    %22 = arith.subf %13, %11 : vector<16x18xf32>
    %23 = vector.extract_strided_slice %21 {offsets = [0, 2], sizes = [16, 16], strides = [1, 1]} : vector<16x18xf32> to vector<16x16xf32>
    %24 = vector.extract_strided_slice %21 {offsets = [0, 0], sizes = [16, 16], strides = [1, 1]} : vector<16x18xf32> to vector<16x16xf32>
    %25 = arith.subf %23, %24 : vector<16x16xf32>
    %26 = vector.extract_strided_slice %22 {offsets = [0, 0], sizes = [16, 16], strides = [1, 1]} : vector<16x18xf32> to vector<16x16xf32>
    %cst_22 = arith.constant 3.000000e+00 : f32
    %27 = vector.broadcast %cst_22 : f32 to vector<16x16xf32>
    %28 = arith.mulf %27, %26 : vector<16x16xf32>
    %29 = vector.extract_strided_slice %22 {offsets = [0, 1], sizes = [16, 16], strides = [1, 1]} : vector<16x18xf32> to vector<16x16xf32>
    %cst_23 = arith.constant 1.000000e+01 : f32
    %30 = vector.broadcast %cst_23 : f32 to vector<16x16xf32>
    %31 = arith.mulf %30, %29 : vector<16x16xf32>
    %32 = arith.addf %28, %31 : vector<16x16xf32>
    %33 = vector.extract_strided_slice %22 {offsets = [0, 2], sizes = [16, 16], strides = [1, 1]} : vector<16x18xf32> to vector<16x16xf32>
    %cst_24 = arith.constant 3.000000e+00 : f32
    %34 = vector.broadcast %cst_24 : f32 to vector<16x16xf32>
    %35 = arith.mulf %34, %33 : vector<16x16xf32>
    %36 = arith.addf %32, %35 : vector<16x16xf32>
    %37 = arith.mulf %25, %25 : vector<16x16xf32>
    %38 = arith.mulf %36, %36 : vector<16x16xf32>
    %39 = arith.addf %37, %38 : vector<16x16xf32>
    %cst_25 = arith.constant 9.99999997E-7 : f32
    %40 = vector.broadcast %cst_25 : f32 to vector<16x16xf32>
    %41 = arith.addf %39, %40 : vector<16x16xf32>
    %42 = math.sqrt %41 : vector<16x16xf32>
    %c0_i32 = arith.constant 0 : i32
    %43 = arith.cmpi eq, %arg1, %c0_i32 : i32
    %44 = arith.extui %43 : i1 to i32
    %c0_i32_26 = arith.constant 0 : i32
    %45 = arith.cmpi ne, %44, %c0_i32_26 : i32
    scf.if %45 {
      %cst_41 = arith.constant 0.000000e+00 : f32
      %63 = vector.broadcast %cst_41 : f32 to vector<1x1x1xf32>
      %c0_42 = arith.constant 0 : index
      %c0_43 = arith.constant 0 : index
      %c0_44 = arith.constant 0 : index
      %64 = vector.load %arg3[%c0_42, %c0_43, %c0_44] : memref<1x1x1xf32, #tpu.memory_space<vmem>>, vector<1x1x1xf32>
      tpu.vector_store %arg3[%c0_42, %c0_43, %c0_44], %63 {strides = array<i32>} : memref<1x1x1xf32, #tpu.memory_space<vmem>>, vector<1x1x1xf32>,
      %cst_45 = arith.constant 0.000000e+00 : f32
      %65 = vector.broadcast %cst_45 : f32 to vector<1x1x1xf32>
      %c0_46 = arith.constant 0 : index
      %c0_47 = arith.constant 0 : index
      %c0_48 = arith.constant 0 : index
      %66 = vector.load %arg4[%c0_46, %c0_47, %c0_48] : memref<1x1x1xf32, #tpu.memory_space<vmem>>, vector<1x1x1xf32>
      tpu.vector_store %arg4[%c0_46, %c0_47, %c0_48], %65 {strides = array<i32>} : memref<1x1x1xf32, #tpu.memory_space<vmem>>, vector<1x1x1xf32>,
    } else {
    }
    %c0_27 = arith.constant 0 : index
    %c0_28 = arith.constant 0 : index
    %c0_29 = arith.constant 0 : index
    %46 = vector.load %arg3[%c0_27, %c0_28, %c0_29] : memref<1x1x1xf32, #tpu.memory_space<vmem>>, vector<1x1x1xf32>
    %47 = vector.shape_cast %42 : vector<16x16xf32> to vector<1x16x16xf32>
    %cst_30 = arith.constant dense<0.000000e+00> : vector<1xf32>
    %48 = vector.multi_reduction <add>, %47, %cst_30 [1, 2] : vector<1x16x16xf32> to vector<1xf32>
    %49 = vector.shape_cast %48 : vector<1xf32> to vector<1x1x1xf32>
    %50 = vector.extract %49[0, 0, 0] : f32 from vector<1x1x1xf32>
    %51 = vector.broadcast %50 : f32 to vector<1x1x1xf32>
    %52 = arith.addf %46, %51 : vector<1x1x1xf32>
    %c0_31 = arith.constant 0 : index
    %c0_32 = arith.constant 0 : index
    %c0_33 = arith.constant 0 : index
    %53 = vector.load %arg3[%c0_31, %c0_32, %c0_33] : memref<1x1x1xf32, #tpu.memory_space<vmem>>, vector<1x1x1xf32>
    tpu.vector_store %arg3[%c0_31, %c0_32, %c0_33], %52 {strides = array<i32>} : memref<1x1x1xf32, #tpu.memory_space<vmem>>, vector<1x1x1xf32>,
    %c0_34 = arith.constant 0 : index
    %c0_35 = arith.constant 0 : index
    %c0_36 = arith.constant 0 : index
    %54 = vector.load %arg4[%c0_34, %c0_35, %c0_36] : memref<1x1x1xf32, #tpu.memory_space<vmem>>, vector<1x1x1xf32>
    %55 = arith.mulf %42, %42 : vector<16x16xf32>
    %56 = vector.shape_cast %55 : vector<16x16xf32> to vector<1x16x16xf32>
    %cst_37 = arith.constant dense<0.000000e+00> : vector<1xf32>
    %57 = vector.multi_reduction <add>, %56, %cst_37 [1, 2] : vector<1x16x16xf32> to vector<1xf32>
    %58 = vector.shape_cast %57 : vector<1xf32> to vector<1x1x1xf32>
    %59 = vector.extract %58[0, 0, 0] : f32 from vector<1x1x1xf32>
    %60 = vector.broadcast %59 : f32 to vector<1x1x1xf32>
    %61 = arith.addf %54, %60 : vector<1x1x1xf32>
    %c0_38 = arith.constant 0 : index
    %c0_39 = arith.constant 0 : index
    %c0_40 = arith.constant 0 : index
    %62 = vector.load %arg4[%c0_38, %c0_39, %c0_40] : memref<1x1x1xf32, #tpu.memory_space<vmem>>, vector<1x1x1xf32>
    tpu.vector_store %arg4[%c0_38, %c0_39, %c0_40], %61 {strides = array<i32>} : memref<1x1x1xf32, #tpu.memory_space<vmem>>, vector<1x1x1xf32>,
    return
  }
  func.func @transform_0(%arg0: i32, %arg1: i32) -> (i32, i32, i32, i32) {
    %c0_i32 = arith.constant 0 : i32
    %c0_i32_0 = arith.constant 0 : i32
    %c0_i32_1 = arith.constant 0 : i32
    return %arg1, %arg0, %c0_i32, %c0_i32_0 : i32, i32, i32, i32
  }
  func.func @transform_1(%arg0: i32, %arg1: i32) -> (i32, i32, i32) {
    %c0_i32 = arith.constant 0 : i32
    %c0_i32_0 = arith.constant 0 : i32
    %c0_i32_1 = arith.constant 0 : i32
    return %arg0, %c0_i32, %c0_i32_0 : i32, i32, i32
  }
  func.func @transform_2(%arg0: i32, %arg1: i32) -> (i32, i32, i32) {
    %c0_i32 = arith.constant 0 : i32
    %c0_i32_0 = arith.constant 0 : i32
    %c0_i32_1 = arith.constant 0 : i32
    return %arg0, %c0_i32, %c0_i32_0 : i32, i32, i32
  }
}

</mosaic_0001>

<llo_original>
// kernel: tpu_custom_call.1
$region0: #{tpu_custom_call.1}
  #allocation0 [shape = 'u32[]', space=smem, size = 0x4, offset = 0x4, fixed_abs, tag = 'smem constant byte address 0x4 - core index']
  #allocation1 [shape = 'u32[144,128]{1,0:T(1,128)}', space=vmem, size = 0x12000, scoped, tag = 'internal scratch']
  #allocation2 [shape = 'f32[18,18]{1,0:T(8,128)}', space=vmem, size = 0x3000, scoped, tag = 'scratch operand']
  %s0 = inlined_call_operand.hbm [shape: f32[2,4,16,16], index: 0, kind: input, shape index: {}]
  %s1 = inlined_call_operand.vmem [shape: f32[4,1,1], index: 1, kind: output, shape index: {0}]
  %s2 = inlined_call_operand.vmem [shape: f32[4,1,1], index: 2, kind: output, shape index: {1}]
  %3 = xla_tuple %s1, %s2
  %s4 = sld [smem:[#allocation0]]
  $region53: #{tpu_custom_call.1} parent=0
    _
  %s6 = ssub.s32 1, %s4
  %s7 = scalar_select 0, %s6, %s4
  $region1: #{tpu_custom_call.1} parent=0
    #allocation3 [shape = 'u8[16384]{0}', space=vmem, size = 0x4000, scoped, tag = 'input window, operand 0']
    #allocation4 [shape = 's32[2]{0}', space=sflag, size = 0x8, scoped, tag = 'scoped memory for tpu_custom_call.1']
    %8 = vsyncpa [#allocation4], 0
    %s9 = scalar_lea.sflag [#allocation4], 1
    %10 = vsyncpa %s9, 0
    loop: start=0, step=1, limit=10
    $region2: #{tpu_custom_call.1} parent=1 // loop_pre_header
      _
    $region3: #{tpu_custom_call.1} parent=1 // loop_header
      %s12 = sphi 0, %s16
      %p13 = scmp.ge.s32.totalorder %s12, 10
      %s19 = sphi 0, %s31
      %s20 = sphi 0, %s27
      %s21 = sphi 0, %s19
      %s22 = sphi 0, %s20
      %s23 = sphi 0, %s21
      %s24 = sphi 0, %s22
      %s36 = sphi 0, %s38
      %s39 = sphi 0, %s36
      %s40 = sphi 0, %s39
      %s56 = sphi 0, %s40
      %s62 = sphi 0, %s64
      %s65 = sphi 0, %s62
      %s66 = sphi 0, %s65
      %s82 = sphi 0, %s66
      %s88 = sphi 0, %s90
      %s91 = sphi 0, %s88
      %s92 = sphi 0, %s91
      %s108 = sphi 0, %s92
    $region4: #{tpu_custom_call.1} parent=1 // loop_header_branch
      %15 = sbr.rel (%p13) target = $region8
    $region5: #{tpu_custom_call.1} parent=1 // loop_body
      %s17 = ssub.s32 %s12, 1
      %s18 = ssub.s32 %s12, 2
      %s25 = sadd.s32 1, %s20
      %p26 = scmp.ge.s32.totalorder %s25, 2
      %s27 = scalar_select %p26, 0, %s25
      %s28 = sadd.s32 1, %s19
      %s29 = scalar_select %p26, %s28, %s19
      %p30 = scmp.ge.s32.totalorder %s29, 4
      %s31 = scalar_select %p30, 0, %s29
      %s32 = ssub.s32 %s20, %s27
      %s33 = ssub.s32 %s19, %s31
      %s34 = sor.u32 %s32, %s33
      %p35 = scmp.eq.s32.totalorder %s34, 0
      %s37 = sadd.s32 %s36, 1
      %s38 = scalar_select %p35, %s36, %s37
      %p41 = pneg %p35
      %p42 = scmp.eq.s32.totalorder %s12, 7
      %p43 = por %p41, %p42
      %p44 = scmp.ne.s32.totalorder %s36, %s39
      %p45 = scmp.eq.s32.totalorder %s12, 0
      %p46 = por %p44, %p45
      %p47 = scmp.ne.s32.totalorder %s36, %s39
      %p48 = scmp.eq.s32.totalorder %s17, 7
      %p49 = por %p47, %p48
      %p50 = scmp.ne.s32.totalorder %s39, %s40
      %p51 = scmp.eq.s32.totalorder %s17, 0
      %p52 = por %p50, %p51
      %p53 = scmp.ne.s32.totalorder %s39, %s40
      %p54 = scmp.eq.s32.totalorder %s18, 7
      %p55 = por %p53, %p54
      %p57 = scmp.ne.s32.totalorder %s40, %s56
      %p58 = scmp.eq.s32.totalorder %s18, 0
      %p59 = por %p57, %p58
      %s60 = ssub.s32 %s19, %s31
      %p61 = scmp.eq.s32.totalorder %s60, 0
      %s63 = sadd.s32 %s62, 1
      %s64 = scalar_select %p61, %s62, %s63
      %p67 = pneg %p61
      %p68 = scmp.eq.s32.totalorder %s12, 7
      %p69 = por %p67, %p68
      %p70 = scmp.ne.s32.totalorder %s62, %s65
      %p71 = scmp.eq.s32.totalorder %s12, 0
      %p72 = por %p70, %p71
      %p73 = scmp.ne.s32.totalorder %s62, %s65
      %p74 = scmp.eq.s32.totalorder %s17, 7
      %p75 = por %p73, %p74
      %p76 = scmp.ne.s32.totalorder %s65, %s66
      %p77 = scmp.eq.s32.totalorder %s17, 0
      %p78 = por %p76, %p77
      %p79 = scmp.ne.s32.totalorder %s65, %s66
      %p80 = scmp.eq.s32.totalorder %s18, 7
      %p81 = por %p79, %p80
      %p83 = scmp.ne.s32.totalorder %s66, %s82
      %p84 = scmp.eq.s32.totalorder %s18, 0
      %p85 = por %p83, %p84
      %s86 = ssub.s32 %s19, %s31
      %p87 = scmp.eq.s32.totalorder %s86, 0
      %s89 = sadd.s32 %s88, 1
      %s90 = scalar_select %p87, %s88, %s89
      %p93 = pneg %p87
      %p94 = scmp.eq.s32.totalorder %s12, 7
      %p95 = por %p93, %p94
      %p96 = scmp.ne.s32.totalorder %s88, %s91
      %p97 = scmp.eq.s32.totalorder %s12, 0
      %p98 = por %p96, %p97
      %p99 = scmp.ne.s32.totalorder %s88, %s91
      %p100 = scmp.eq.s32.totalorder %s17, 7
      %p101 = por %p99, %p100
      %p102 = scmp.ne.s32.totalorder %s91, %s92
      %p103 = scmp.eq.s32.totalorder %s17, 0
      %p104 = por %p102, %p103
      %p105 = scmp.ne.s32.totalorder %s91, %s92
      %p106 = scmp.eq.s32.totalorder %s18, 7
      %p107 = por %p105, %p106
      %p109 = scmp.ne.s32.totalorder %s92, %s108
      %p110 = scmp.eq.s32.totalorder %s18, 0
      %p111 = por %p109, %p110
      %p112 = scmp.le.s32.totalorder 1, %s12
      %p113 = scmp.lt.s32.totalorder %s12, 9
      %p114 = pnand %p112, %p113
      %p115 = pneg %p114
      // Predicated region
      $region9: #{tpu_custom_call.1} parent=5 // pred_check
        _
      $region10: #{tpu_custom_call.1} parent=5 // pred_check_branch
        %117 = sbr.rel (%p114) target = $region12
      $region11: #{tpu_custom_call.1} parent=5 // pred_region
        %s118 = ssub.s32 %s12, 1
      $region12: #{tpu_custom_call.1} parent=5 // pred_fallthru
        _
      %p119 = scmp.lt.s32.totalorder %s12, 8
      // Predicated region
      $region13: #{tpu_custom_call.1} parent=5 // pred_check
        %p120 = pneg %p119
      $region14: #{tpu_custom_call.1} parent=5 // pred_check_branch
        %122 = sbr.rel (%p120) target = $region16
      $region15: #{tpu_custom_call.1} parent=5 // pred_region
        // Predicated region
        $region17: #{tpu_custom_call.1} parent=15 // pred_check
          %p123 = pneg %p46
        $region18: #{tpu_custom_call.1} parent=15 // pred_check_branch
          %125 = sbr.rel (%p123) target = $region20
        $region19: #{tpu_custom_call.1} parent=15 // pred_region
          %s126 = sand.u32 %s36, 1
          %s127 = scalar_lea.sflag [#allocation4], %s126
          %s128 = sand.u32 %s36, 1
          %s129 = smul.addr %s128, 16
          %s130 = scalar_lea.vmem [#allocation3], %s129
          %s132 = ssub.s32 256, 256
          %133 = vsyncadd %s127, %s132
          %s134 = smul.addr %s19, 2
          %s135 = smul.addr %s20, 8
          %s136 = sadd.s32 %s134, %s135
          %s137 = smul.addr %s136, 128
          %s138 = scalar_lea.hbm %s0, %s137
          %s139 = sshll.u32 %s130, 4
          %s140 = int_to_ptr.vmem [resolvable:$true] %s139
          %145 = dma.hbm_to_vmem [thread:$0]  %s138, 256, %s140, %s127, 128, 128, 8
        $region20: #{tpu_custom_call.1} parent=15 // pred_fallthru
          _
      $region16: #{tpu_custom_call.1} parent=5 // pred_fallthru
        _
      %p146 = scmp.le.s32.totalorder 1, %s12
      %p147 = scmp.lt.s32.totalorder %s12, 9
      %p148 = pnand %p146, %p147
      %p149 = pneg %p148
      // Predicated region
      $region21: #{tpu_custom_call.1} parent=5 // pred_check
        _
      $region22: #{tpu_custom_call.1} parent=5 // pred_check_branch
        %151 = sbr.rel (%p148) target = $region24
      $region23: #{tpu_custom_call.1} parent=5 // pred_region
        %s152 = ssub.s32 %s12, 1
        %s153 = sand.u32 %s39, 1
        %s154 = scalar_lea.sflag [#allocation4], %s153
        %s155 = sand.u32 %s39, 1
        %s156 = smul.addr %s155, 16
        %s157 = scalar_lea.vmem [#allocation3], %s156
        // Predicated region
        $region25: #{tpu_custom_call.1} parent=23 // pred_check
          %p158 = pneg %p52
        $region26: #{tpu_custom_call.1} parent=23 // pred_check_branch
          %160 = sbr.rel (%p158) target = $region28
        $region27: #{tpu_custom_call.1} parent=23 // pred_region
          %161 = dma.done %s154, 256
        $region28: #{tpu_custom_call.1} parent=23 // pred_fallthru
          _
        %s162 = sand.u32 %s39, 1
        %s163 = scalar_lea.sflag [#allocation4], %s162
        %s164 = sand.u32 %s39, 1
        %s165 = smul.addr %s164, 16
        %s166 = scalar_lea.vmem [#allocation3], %s165
        %p167 = pneg %p52
        %p168 = pneg %p49
        %p169 = pneg %p78
        %p170 = pneg %p75
        %p171 = scmp.lt.s32.totalorder %s21, 3
        %s172 = scalar_select %p171, %s21, 3
        %s173 = scalar_lea.vmem %s1, %s172
        %p174 = pneg %p104
        %p175 = pneg %p101
        %p176 = scmp.lt.s32.totalorder %s21, 3
        %s177 = scalar_select %p176, %s21, 3
        %s178 = scalar_lea.vmem %s2, %s177
        %p179 = scmp.lt.s32.totalorder %s21, 3
        %s180 = scalar_select %p179, %s21, 3
        %s181 = scalar_lea.vmem %s1, %s180
        %p182 = scmp.lt.s32.totalorder %s21, 3
        %s183 = scalar_select %p182, %s21, 3
        %s184 = scalar_lea.vmem %s2, %s183
        %v185 = vld [vmem:[%s157] sm:$0xff]
        %v186 = vld [vmem:[%s157 + $0x8] sm:$0xff]
        %vm187 = vcmask 139264
        %188 = vst.msk [vmem:[#allocation2] sm:$0x1] %vm187, 0.0
        %189 = vst.msk [vmem:[#allocation2 + $0x11] sm:$0x1] %vm187, 0.0
        %vm190 = vcmask 7168
        %191 = vst.msk [vmem:[#allocation2] sm:$0xff] %vm190, 0.0
        %192 = vst.msk [vmem:[#allocation2 + $0x8] sm:$0xff] %vm190, 0.0
        %vm193 = vcmask 1024
        %194 = vst.msk [vmem:[#allocation2 + $0x10] sm:$0x3] %vm193, 0.0
        %vm195 = vcmask 146568
        %196 = vst.msk [vmem:[#allocation2] sm:$0xff] %vm195, 0.0
        %197 = vst.msk [vmem:[#allocation2 + $0x8] sm:$0xff] %vm195, 0.0
        %vm198 = vcmask 140424
        %199 = vst.msk [vmem:[#allocation2 + $0x10] sm:$0x3] %vm198, 0.0
        %202 = vrot.lane.b32.xlu0 %v185, 1
        %v203 = vpop.permute.xlu0 %202
        %204 = vrot.lane.b32.xlu0 %v186, 1
        %v205 = vpop.permute.xlu0 %204
        %vm208 = vcmask 138248
        %209 = vst.msk [vmem:[#allocation2 + $0x1] sm:$0xff] %vm208, %v203
        %210 = vst.msk [vmem:[#allocation2 + $0x9] sm:$0xff] %vm208, %v205
        %v211 = vld [vmem:[#allocation2] sm:$0xff]
        %v212 = vld [vmem:[#allocation2 + $0x8] sm:$0xff]
        %v213 = vld [vmem:[#allocation2 + $0x1] sm:$0xff]
        %v214 = vld [vmem:[#allocation2 + $0x9] sm:$0xff]
        %v215 = vld [vmem:[#allocation2 + $0x2] sm:$0xff]
        %v216 = vld [vmem:[#allocation2 + $0xa] sm:$0xff]
        %v217 = vmul.f32 %v211, 3.0
        %v218 = vmul.f32 %v212, 3.0
        %v219 = vmul.f32 %v213, 10.0
        %v220 = vmul.f32 %v214, 10.0
        %v221 = vadd.f32 %v217, %v219
        %v222 = vadd.f32 %v218, %v220
        %v223 = vmul.f32 %v215, 3.0
        %v224 = vmul.f32 %v216, 3.0
        %v225 = vadd.f32 %v221, %v223
        %v226 = vadd.f32 %v222, %v224
        %v227 = vsub.f32 %v215, %v211
        %v228 = vsub.f32 %v216, %v212
        %231 = vrot.lane.b32.xlu0 %v225, 2
        %v232 = vpop.permute.xlu0 %231
        %233 = vrot.lane.b32.xlu0 %v226, 2
        %v234 = vpop.permute.xlu0 %233
        %v237 = vsub.f32 %v225, %v232
        %v238 = vsub.f32 %v226, %v234
        %v239 = vmul.f32 %v227, 3.0
        %v240 = vmul.f32 %v228, 3.0
        %v241 = vmul.f32 %v227, 10.0
        %v242 = vmul.f32 %v228, 10.0
        %245 = vrot.lane.b32.xlu0 %v241, 127
        %v246 = vpop.permute.xlu0 %245
        %247 = vrot.lane.b32.xlu0 %v242, 127
        %v248 = vpop.permute.xlu0 %247
        %v251 = vadd.f32 %v239, %v246
        %v252 = vadd.f32 %v240, %v248
        %255 = vrot.lane.b32.xlu0 %v239, 126
        %v256 = vpop.permute.xlu0 %255
        %257 = vrot.lane.b32.xlu0 %v240, 126
        %v258 = vpop.permute.xlu0 %257
        %v261 = vadd.f32 %v251, %v256
        %v262 = vadd.f32 %v252, %v258
        %v263 = vmul.f32 %v237, %v237
        %v264 = vmul.f32 %v238, %v238
        %v265 = vmul.f32 %v261, %v261
        %v266 = vmul.f32 %v262, %v262
        %269 = vrot.lane.b32.xlu0 %v265, 2
        %v270 = vpop.permute.xlu0 %269
        %271 = vrot.lane.b32.xlu0 %v266, 2
        %v272 = vpop.permute.xlu0 %271
        %v275 = vadd.f32 %v263, %v270
        %v276 = vadd.f32 %v264, %v272
        %v277 = vadd.f32 %v275, 1e-06
        %v278 = vadd.f32 %v276, 1e-06
        %v279 = vrsqrt.pop %v277
        %v280 = vmul.f32 %v277, %v279
        %vm281 = vcmp.eq.f32.partialorder %v277, inf
        %v282 = vsel %vm281, %v277, %v280
        %vm283 = vcmp.eq.f32.partialorder %v277, 0.0
        %v284 = vand.u32 %v277, 2147483648
        %v285 = vsel %vm283, %v284, %v282
        %v286 = vrsqrt.pop %v278
        %v287 = vmul.f32 %v278, %v286
        %vm288 = vcmp.eq.f32.partialorder %v278, inf
        %v289 = vsel %vm288, %v278, %v287
        %vm290 = vcmp.eq.f32.partialorder %v278, 0.0
        %v291 = vand.u32 %v278, 2147483648
        %v292 = vsel %vm290, %v291, %v289
        %p293 = scmp.eq.s32.totalorder %s22, 0
        // Predicated region
        $region29: #{tpu_custom_call.1} parent=23 // pred_check
          %p294 = pneg %p293
        $region30: #{tpu_custom_call.1} parent=23 // pred_check_branch
          %296 = sbr.rel (%p294) target = $region32
        $region31: #{tpu_custom_call.1} parent=23 // pred_region
          %vm297 = vcmask 0
          %298 = vst.msk [vmem:[%s181] sm:$0x1] %vm297, 0.0
          %299 = vst.msk [vmem:[%s184] sm:$0x1] %vm297, 0.0
        $region32: #{tpu_custom_call.1} parent=23 // pred_fallthru
          _
        %v300 = vld [vmem:[%s181] sm:$0x1]
        %303 = vrot.lane.b32.xlu0 %v285, 126
        %v304 = vpop.permute.xlu0 %303
        %305 = vrot.lane.b32.xlu0 %v292, 126
        %v306 = vpop.permute.xlu0 %305
        %vm309 = vcmask 130048
        %v310 = vsel %vm309, %v304, 0.0
        %v311 = vsel %vm309, %v306, 0.0
        %v312 = vadd.f32 %v310, %v311
        %313 = vadd.xlane.f32.xlu0 %v312
        %v314 = vpop.xlane.xlu0 %313
        %v315 = vrot.slane %v314, 4
        %v316 = vadd.f32 %v314, %v315
        %v317 = vrot.slane %v316, 2
        %v318 = vadd.f32 %v316, %v317
        %v319 = vrot.slane %v318, 1
        %v320 = vadd.f32 %v318, %v319
        %s321 = vtos %v320
        %v322 = vstv %s321
        %v323 = vadd.f32 %v300, %v322
        %vm324 = vcmask 0
        %325 = vst.msk [vmem:[%s181] sm:$0x1] %vm324, %v323
        %v326 = vld [vmem:[%s184] sm:$0x1]
        %v327 = vmul.f32 %v285, %v285
        %v328 = vmul.f32 %v292, %v292
        %331 = vrot.lane.b32.xlu0 %v327, 126
        %v332 = vpop.permute.xlu0 %331
        %333 = vrot.lane.b32.xlu0 %v328, 126
        %v334 = vpop.permute.xlu0 %333
        %v337 = vsel %vm309, %v332, 0.0
        %v338 = vsel %vm309, %v334, 0.0
        %v339 = vadd.f32 %v337, %v338
        %340 = vadd.xlane.f32.xlu0 %v339
        %v341 = vpop.xlane.xlu0 %340
        %v342 = vrot.slane %v341, 4
        %v343 = vadd.f32 %v341, %v342
        %v344 = vrot.slane %v343, 2
        %v345 = vadd.f32 %v343, %v344
        %v346 = vrot.slane %v345, 1
        %v347 = vadd.f32 %v345, %v346
        %s348 = vtos %v347
        %v349 = vstv %s348
        %v350 = vadd.f32 %v326, %v349
        %351 = vst.msk [vmem:[%s184] sm:$0x1] %vm324, %v350
        %p352 = scmp.lt.s32.totalorder %s21, 3
        %s353 = scalar_select %p352, %s21, 3
        %s354 = scalar_lea.vmem %s1, %s353
        %p355 = scmp.lt.s32.totalorder %s21, 3
        %s356 = scalar_select %p355, %s21, 3
        %s357 = scalar_lea.vmem %s2, %s356
        // Predicated region
        $region33: #{tpu_custom_call.1} parent=23 // pred_check
          %p358 = pneg %p75
        $region34: #{tpu_custom_call.1} parent=23 // pred_check_branch
          %360 = sbr.rel (%p358) target = $region36
        $region35: #{tpu_custom_call.1} parent=23 // pred_region
          _
        $region36: #{tpu_custom_call.1} parent=23 // pred_fallthru
          _
        // Predicated region
        $region37: #{tpu_custom_call.1} parent=23 // pred_check
          %p361 = pneg %p101
        $region38: #{tpu_custom_call.1} parent=23 // pred_check_branch
          %363 = sbr.rel (%p361) target = $region40
        $region39: #{tpu_custom_call.1} parent=23 // pred_region
          _
        $region40: #{tpu_custom_call.1} parent=23 // pred_fallthru
          _
      $region24: #{tpu_custom_call.1} parent=5 // pred_fallthru
        _
      %p364 = scmp.le.s32.totalorder 2, %s12
      // Predicated region
      $region41: #{tpu_custom_call.1} parent=5 // pred_check
        %p365 = pneg %p364
      $region42: #{tpu_custom_call.1} parent=5 // pred_check_branch
        %367 = sbr.rel (%p365) target = $region44
      $region43: #{tpu_custom_call.1} parent=5 // pred_region
        %s368 = ssub.s32 %s12, 2
        // Predicated region
        $region45: #{tpu_custom_call.1} parent=43 // pred_check
          %p369 = pneg %p81
        $region46: #{tpu_custom_call.1} parent=43 // pred_check_branch
          %371 = sbr.rel (%p369) target = $region48
        $region47: #{tpu_custom_call.1} parent=43 // pred_region
          %p372 = scmp.lt.s32.totalorder %s23, 3
          %s373 = scalar_select %p372, %s23, 3
          %s374 = scalar_lea.vmem %s1, %s373
        $region48: #{tpu_custom_call.1} parent=43 // pred_fallthru
          _
        // Predicated region
        $region49: #{tpu_custom_call.1} parent=43 // pred_check
          %p375 = pneg %p107
        $region50: #{tpu_custom_call.1} parent=43 // pred_check_branch
          %377 = sbr.rel (%p375) target = $region52
        $region51: #{tpu_custom_call.1} parent=43 // pred_region
          %p378 = scmp.lt.s32.totalorder %s23, 3
          %s379 = scalar_select %p378, %s23, 3
          %s380 = scalar_lea.vmem %s2, %s379
        $region52: #{tpu_custom_call.1} parent=43 // pred_fallthru
          _
      $region44: #{tpu_custom_call.1} parent=5 // pred_fallthru
        _
    $region6: #{tpu_custom_call.1} parent=1 // loop_footer
      %s16 = sadd.s32 1, %s12
    $region7: #{tpu_custom_call.1} parent=1 // loop_footer_branch
      %11 = sbr.rel target = $region3
    $region8: #{tpu_custom_call.1} parent=1 // loop_exit
      _
    %381 = vsyncpa [#allocation4], 1
    %s382 = scalar_lea.sflag [#allocation4], 1
    %383 = vsyncpa %s382, 1

</llo_original>
